<compile_context>
chip_gen: v5e
topology: v5e:2x2
jax: 0.10.0
libtpu: 0.0.40
codegen_flags: <defaults>
</compile_context>

<pallas_src>
import functools

import jax
import jax.numpy as jnp
from jax.experimental import pallas as pl
from jax.experimental.pallas import tpu as pltpu


def _round_up(n: int, m: int) -> int:
    return ((n + m - 1) // m) * m


def _cdiv(a: int, b: int) -> int:
    return -(-a // b)


# ----------------------------- Pallas kernel -------------------------------

def _fused_head_kernel(x_ref, w1_ref, b1_ref, w2_ref, b2_ref, o_ref, acc_ref,
                       *, inv_hw, hw, thw, apply_mask):
    """GAP (streamed over HW chunks) + two Linears, fused.

    x_ref  : [TB, C, THW]   current batch tile / HW chunk (no padding in HBM)
    w1_ref : [C,  F1p]      pre-transposed, zero-padded, resident
    b1_ref : [1,  F1p]
    w2_ref : [F1p, F2p]     pre-transposed, zero-padded, resident
    b2_ref : [1,  F2p]
    o_ref  : [TB, F2p]
    acc_ref: [TB, C] f32    GAP accumulator (scratch)
    """
    j = pl.program_id(1)

    @pl.when(j == 0)
    def _():
        acc_ref[...] = jnp.zeros_like(acc_ref)

    x = x_ref[...]                                            # [TB, C, THW]
    if apply_mask:
        # Last HW chunk is ragged: zero the out-of-bounds (garbage) columns.
        col = jax.lax.broadcasted_iota(jnp.int32, x.shape, dimension=2) + j * thw
        x = jnp.where(col < hw, x, jnp.zeros_like(x))
    # Accumulate directly in f32 (no full-tile f32 copy of x).
    acc_ref[...] += jnp.sum(x, axis=-1, dtype=jnp.float32)    # [TB, C]

    @pl.when(j == pl.num_programs(1) - 1)
    def _():
        # GAP finalize; feed the MXU in the weights' dtype, accumulate in f32.
        pooled = (acc_ref[...] * inv_hw).astype(w1_ref.dtype)          # [TB, C]
        feats = (
            jnp.dot(pooled, w1_ref[...], preferred_element_type=jnp.float32)
            + b1_ref[...].astype(jnp.float32)
        )                                                              # [TB, F1p]
        feats = feats.astype(w2_ref.dtype)
        clf = (
            jnp.dot(feats, w2_ref[...], preferred_element_type=jnp.float32)
            + b2_ref[...].astype(jnp.float32)
        )                                                              # [TB, F2p]
        o_ref[...] = clf.astype(o_ref.dtype)


# --------------------------- tiling / VMEM plan -----------------------------

def _tpu_vmem_capacity_bytes() -> int:
    try:
        info = pltpu.get_tpu_info()
        cap = int(getattr(info, "vmem_capacity_bytes", 0) or 0)
        if cap > 0:
            return cap
    except Exception:
        pass
    return 64 << 20  # conservative default: v7x per-TensorCore VMEM


def _plan_tiling(B, C, HW, F2p, x_itemsize, out_itemsize, weight_bytes):
    """Pick (TB, THW, vmem_limit_bytes) from the real per-chip VMEM budget."""
    cap = _tpu_vmem_capacity_bytes()
    budget = (cap * 3) // 4                               # compiler headroom
    avail = max(budget - weight_bytes - (2 << 20), 4 << 20)

    c_sub = _round_up(C, 8)        # sublane-padded C of the x tile in VMEM
    c_lane = _round_up(C, 128)     # lane-padded C of the f32 accumulator

    def tile_bytes(tb, thw):
        x_b = 2 * tb * c_sub * _round_up(thw, 128) * x_itemsize   # dbl-buffered
        o_b = 2 * tb * F2p * out_itemsize                         # dbl-buffered
        a_b = tb * c_lane * 4                                     # accumulator
        return x_b + o_b + a_b

    tb_min = B if B < 8 else 8
    if tile_bytes(tb_min, HW) <= avail:
        # Whole spatial row fits: no HW chunking, grow the batch tile.
        thw = HW
        tb_cap = max(tb_min, int(avail // max(tile_bytes(1, HW), 1)))
        tb_cap = min(tb_cap, 512)
        if B >= 16:
            # Keep at least 2 batch tiles so the "parallel" axis can shard
            # across both TensorCores on multi-TC chips.
            tb_cap = min(tb_cap, _round_up(_cdiv(B, 2), 8))
        tb = B if B <= tb_cap else max(8, (tb_cap // 8) * 8)
    else:
        # Huge C*HW per row: stream lane-aligned HW chunks through the
        # accumulator (keeps double-buffered DMA overlap on 64 MiB VMEM parts).
        tb = tb_min
        thw = 128
        hw_cap = _round_up(HW, 128)
        while thw * 2 <= hw_cap and tile_bytes(tb, thw * 2) <= avail:
            thw *= 2

    est = weight_bytes + tile_bytes(tb, thw) + (4 << 20)
    vmem_limit = int(min(cap, max(est, 32 << 20)))
    return tb, thw, vmem_limit


def _resident_spec(block_shape):
    """BlockSpec for weights/biases: constant block -> single-buffered."""
    index_map = lambda i, j: (0,) * len(block_shape)
    try:
        return pl.BlockSpec(block_shape, index_map, pipeline_mode=pl.Buffered(1))
    except (AttributeError, TypeError):   # older jax without pipeline_mode
        return pl.BlockSpec(block_shape, index_map)


# ------------------------------ JAX wrapper --------------------------------

def my_model_forward(x, params):
    """x: [B, C, H, W] NCHW.  Returns clf logits [B, feature_n]."""
    w1, b1, w2, b2 = params
    B, C, H, W = x.shape
    F1 = w1.shape[0]            # pretrain_model.classifier.out_features
    F2 = w2.shape[0]            # args.feature_n
    HW = H * W
    out_dtype = x.dtype

    # Lane-dense padded feature dims (weights only; x is NOT padded/copied).
    F1p = _round_up(F1, 128)
    F2p = _round_up(F2, 128)

    # Pre-transpose weights to [in, out] and zero-pad; pad biases (one-time).
    w1t = jnp.pad(w1.T, ((0, 0), (0, F1p - F1)))                    # [C,  F1p]
    b1p = jnp.pad(b1, ((0, F1p - F1),)).reshape(1, F1p)             # [1,  F1p]
    w2t = jnp.pad(w2.T, ((0, F1p - F1), (0, F2p - F2)))             # [F1p,F2p]
    b2p = jnp.pad(b2, ((0, F2p - F2),)).reshape(1, F2p)             # [1,  F2p]

    def _vmem_arr_bytes(a):
        r = _round_up(a.shape[-2], 8)
        c = _round_up(a.shape[-1], 128)
        return r * c * jnp.dtype(a.dtype).itemsize

    weight_bytes = sum(_vmem_arr_bytes(a) for a in (w1t, b1p, w2t, b2p))

    TB, THW, vmem_limit = _plan_tiling(
        B, C, HW, F2p,
        x_itemsize=jnp.dtype(x.dtype).itemsize,
        out_itemsize=jnp.dtype(out_dtype).itemsize,
        weight_bytes=weight_bytes)

    n_b = _cdiv(B, TB)
    n_hw = _cdiv(HW, THW)
    apply_mask = (HW % THW) != 0

    # Zero-copy layout plumbing: flatten spatial dims only (no jnp.pad of x).
    x3 = x.reshape(B, C, HW)

    kernel = functools.partial(
        _fused_head_kernel,
        inv_hw=float(1.0 / HW), hw=HW, thw=THW, apply_mask=apply_mask)

    out_padded = pl.pallas_call(
        kernel,
        out_shape=jax.ShapeDtypeStruct((B, F2p), out_dtype),
        grid_spec=pltpu.PrefetchScalarGridSpec(
            num_scalar_prefetch=0,
            grid=(n_b, n_hw),
            in_specs=[
                pl.BlockSpec((TB, C, THW), lambda i, j: (i, 0, j)),  # x tile
                _resident_spec((C, F1p)),                            # W1^T
                _resident_spec((1, F1p)),                            # b1
                _resident_spec((F1p, F2p)),                          # W2^T
                _resident_spec((1, F2p)),                            # b2
            ],
            out_specs=pl.BlockSpec((TB, F2p), lambda i, j: (i, 0)),
            scratch_shapes=[pltpu.VMEM((TB, C), jnp.float32)],       # GAP acc
        ),
        compiler_params=pltpu.CompilerParams(
            dimension_semantics=("parallel", "arbitrary"),
            vmem_limit_bytes=vmem_limit,
        ),
    )(x3, w1t, b1p, w2t, b2p)

    # Slice the (weight-side) lane padding off.
    return out_padded[:, :F2]


def init_params(key, in_channels, backbone_out, feature_n):
    """Deterministic PyTorch-Linear-style (uniform) init for the two Linears."""
    k1, k2, k3, k4 = jax.random.split(key, 4)
    lim1 = 1.0 / jnp.sqrt(in_channels)
    w1 = jax.random.uniform(k1, (backbone_out, in_channels), jnp.float32, -lim1, lim1)
    b1 = jax.random.uniform(k2, (backbone_out,), jnp.float32, -lim1, lim1)
    lim2 = 1.0 / jnp.sqrt(backbone_out)
    w2 = jax.random.uniform(k3, (feature_n, backbone_out), jnp.float32, -lim2, lim2)
    b2 = jax.random.uniform(k4, (feature_n,), jnp.float32, -lim2, lim2)
    return w1, b1, w2, b2


# --------------------------------- main -------------------------------------

if __name__ == "__main__":
    key = jax.random.PRNGKey(0)
    kx, kp = jax.random.split(key)

    # Small shapes consistent with the module's forward:
    B, C, H, W = 2, 4, 16, 16     # NCHW image batch
    BACKBONE_OUT = 32             # pretrain_model.classifier.out_features
    FEATURE_N = 8                 # args.feature_n

    x = jax.random.normal(kx, (B, C, H, W), dtype=jnp.float32)
    params = init_params(kp, C, BACKBONE_OUT, FEATURE_N)

    out = my_model_forward(x, params)
    out = jax.block_until_ready(out)

    # Pure-JAX reference check of the same semantics.
    w1, b1, w2, b2 = params
    pooled_ref = jnp.mean(x, axis=(2, 3))
    ref = (pooled_ref @ w1.T + b1) @ w2.T + b2
    assert out.shape == (B, FEATURE_N)
    assert jnp.allclose(out, ref, atol=1e-4, rtol=1e-4)

    print("KERNEL_OK")
</pallas_src>

<mosaic_0001>
module attributes {stable_mosaic.version = 11 : i64} {
  func.func @_fused_head_kernel(%arg0: i32, %arg1: i32, %arg2: memref<2x4x256xf32, #tpu.memory_space<vmem>>, %arg3: memref<4x128xf32, #tpu.memory_space<vmem>>, %arg4: memref<1x128xf32, #tpu.memory_space<vmem>>, %arg5: memref<128x128xf32, #tpu.memory_space<vmem>>, %arg6: memref<1x128xf32, #tpu.memory_space<vmem>>, %arg7: memref<2x128xf32, #tpu.memory_space<vmem>>, %arg8: memref<2x4xf32, #tpu.memory_space<vmem>>) attributes {dimension_semantics = [#tpu.dimension_semantics<parallel>, #tpu.dimension_semantics<arbitrary>], iteration_bounds = array<i64: 1, 1>, scalar_prefetch = 0 : i64, scratch_operands = 1 : i64, tpu.core_type = #tpu.core_type<tc>, window_params = [{transform_indices = @transform_0, window_bounds = array<i64: 2, 4, 256>}, {pipeline_mode = #tpu.pipeline_mode<synchronous>, transform_indices = @transform_1, window_bounds = array<i64: 4, 128>}, {pipeline_mode = #tpu.pipeline_mode<synchronous>, transform_indices = @transform_2, window_bounds = array<i64: 1, 128>}, {pipeline_mode = #tpu.pipeline_mode<synchronous>, transform_indices = @transform_3, window_bounds = array<i64: 128, 128>}, {pipeline_mode = #tpu.pipeline_mode<synchronous>, transform_indices = @transform_4, window_bounds = array<i64: 1, 128>}, {transform_indices = @transform_5, window_bounds = array<i64: 2, 128>}]} {
    %c0_i32 = arith.constant 0 : i32
    %0 = arith.cmpi eq, %arg1, %c0_i32 : i32
    %1 = arith.extui %0 : i1 to i32
    %c0_i32_0 = arith.constant 0 : i32
    %2 = arith.cmpi ne, %1, %c0_i32_0 : i32
    scf.if %2 {
      %cst_9 = arith.constant 0.000000e+00 : f32
      %11 = vector.broadcast %cst_9 : f32 to vector<2x4xf32>
      %c0_10 = arith.constant 0 : index
      %c0_11 = arith.constant 0 : index
      %12 = vector.load %arg8[%c0_10, %c0_11] : memref<2x4xf32, #tpu.memory_space<vmem>>, vector<2x4xf32>
      tpu.vector_store %arg8[%c0_10, %c0_11], %11 {strides = array<i32>} : memref<2x4xf32, #tpu.memory_space<vmem>>, vector<2x4xf32>,
    } else {
    }
    %c0 = arith.constant 0 : index
    %c0_1 = arith.constant 0 : index
    %c0_2 = arith.constant 0 : index
    %3 = vector.load %arg2[%c0, %c0_1, %c0_2] : memref<2x4x256xf32, #tpu.memory_space<vmem>>, vector<2x4x256xf32>
    %c0_3 = arith.constant 0 : index
    %c0_4 = arith.constant 0 : index
    %4 = vector.load %arg8[%c0_3, %c0_4] : memref<2x4xf32, #tpu.memory_space<vmem>>, vector<2x4xf32>
    %cst = arith.constant dense<0.000000e+00> : vector<2x4xf32>
    %5 = vector.multi_reduction <add>, %3, %cst [2] : vector<2x4x256xf32> to vector<2x4xf32>
    %6 = arith.addf %4, %5 : vector<2x4xf32>
    %c0_5 = arith.constant 0 : index
    %c0_6 = arith.constant 0 : index
    %7 = vector.load %arg8[%c0_5, %c0_6] : memref<2x4xf32, #tpu.memory_space<vmem>>, vector<2x4xf32>
    tpu.vector_store %arg8[%c0_5, %c0_6], %6 {strides = array<i32>} : memref<2x4xf32, #tpu.memory_space<vmem>>, vector<2x4xf32>,
    %c0_i32_7 = arith.constant 0 : i32
    %8 = arith.cmpi eq, %arg1, %c0_i32_7 : i32
    %9 = arith.extui %8 : i1 to i32
    %c0_i32_8 = arith.constant 0 : i32
    %10 = arith.cmpi ne, %9, %c0_i32_8 : i32
    scf.if %10 {
      %c0_9 = arith.constant 0 : index
      %c0_10 = arith.constant 0 : index
      %11 = vector.load %arg8[%c0_9, %c0_10] : memref<2x4xf32, #tpu.memory_space<vmem>>, vector<2x4xf32>
      %cst_11 = arith.constant 3.906250e-03 : f32
      %12 = vector.broadcast %cst_11 : f32 to vector<2x4xf32>
      %13 = arith.mulf %11, %12 : vector<2x4xf32>
      %c0_12 = arith.constant 0 : index
      %c0_13 = arith.constant 0 : index
      %14 = vector.load %arg3[%c0_12, %c0_13] : memref<4x128xf32, #tpu.memory_space<vmem>>, vector<4x128xf32>
      %cst_14 = arith.constant dense<0.000000e+00> : vector<2x128xf32>
      %15 = tpu.matmul %13, %14, %cst_14 {dimension_numbers = #tpu.dot_dimension_numbers<[1], [0], [0], [1], [0, 0, 1, 1], [], []>} : vector<2x4xf32>, vector<4x128xf32>, vector<2x128xf32> -> vector<2x128xf32>
      %c0_15 = arith.constant 0 : index
      %c0_16 = arith.constant 0 : index
      %16 = vector.load %arg4[%c0_15, %c0_16] : memref<1x128xf32, #tpu.memory_space<vmem>>, vector<1x128xf32>
      %17 = vector.broadcast %16 : vector<1x128xf32> to vector<2x128xf32>
      %18 = arith.addf %15, %17 : vector<2x128xf32>
      %c0_17 = arith.constant 0 : index
      %c0_18 = arith.constant 0 : index
      %19 = vector.load %arg5[%c0_17, %c0_18] : memref<128x128xf32, #tpu.memory_space<vmem>>, vector<128x128xf32>
      %cst_19 = arith.constant dense<0.000000e+00> : vector<2x128xf32>
      %20 = tpu.matmul %18, %19, %cst_19 {dimension_numbers = #tpu.dot_dimension_numbers<[1], [0], [0], [1], [0, 0, 1, 1], [], []>} : vector<2x128xf32>, vector<128x128xf32>, vector<2x128xf32> -> vector<2x128xf32>
      %c0_20 = arith.constant 0 : index
      %c0_21 = arith.constant 0 : index
      %21 = vector.load %arg6[%c0_20, %c0_21] : memref<1x128xf32, #tpu.memory_space<vmem>>, vector<1x128xf32>
      %22 = vector.broadcast %21 : vector<1x128xf32> to vector<2x128xf32>
      %23 = arith.addf %20, %22 : vector<2x128xf32>
      %c0_22 = arith.constant 0 : index
      %c0_23 = arith.constant 0 : index
      %24 = vector.load %arg7[%c0_22, %c0_23] : memref<2x128xf32, #tpu.memory_space<vmem>>, vector<2x128xf32>
      tpu.vector_store %arg7[%c0_22, %c0_23], %23 {strides = array<i32>} : memref<2x128xf32, #tpu.memory_space<vmem>>, vector<2x128xf32>,
    } else {
    }
    return
  }
  func.func @transform_0(%arg0: i32, %arg1: i32) -> (i32, i32, i32) {
    %c0_i32 = arith.constant 0 : i32
    %c0_i32_0 = arith.constant 0 : i32
    return %arg0, %c0_i32, %arg1 : i32, i32, i32
  }
  func.func @transform_1(%arg0: i32, %arg1: i32) -> (i32, i32) {
    %c0_i32 = arith.constant 0 : i32
    %c0_i32_0 = arith.constant 0 : i32
    %c0_i32_1 = arith.constant 0 : i32
    return %c0_i32, %c0_i32_0 : i32, i32
  }
  func.func @transform_2(%arg0: i32, %arg1: i32) -> (i32, i32) {
    %c0_i32 = arith.constant 0 : i32
    %c0_i32_0 = arith.constant 0 : i32
    %c0_i32_1 = arith.constant 0 : i32
    return %c0_i32, %c0_i32_0 : i32, i32
  }
  func.func @transform_3(%arg0: i32, %arg1: i32) -> (i32, i32) {
    %c0_i32 = arith.constant 0 : i32
    %c0_i32_0 = arith.constant 0 : i32
    %c0_i32_1 = arith.constant 0 : i32
    return %c0_i32, %c0_i32_0 : i32, i32
  }
  func.func @transform_4(%arg0: i32, %arg1: i32) -> (i32, i32) {
    %c0_i32 = arith.constant 0 : i32
    %c0_i32_0 = arith.constant 0 : i32
    %c0_i32_1 = arith.constant 0 : i32
    return %c0_i32, %c0_i32_0 : i32, i32
  }
  func.func @transform_5(%arg0: i32, %arg1: i32) -> (i32, i32) {
    %c0_i32 = arith.constant 0 : i32
    %c0_i32_0 = arith.constant 0 : i32
    return %arg0, %c0_i32 : i32, i32
  }
}

</mosaic_0001>

<llo_original>
// kernel: tpu_custom_call.1
$region0: #{tpu_custom_call.1}
  #allocation0 [shape = 'u32[]', space=smem, size = 0x4, offset = 0x4, fixed_abs, tag = 'smem constant byte address 0x4 - core index']
  #allocation1 [shape = 'u32[72,128]{1,0:T(1,128)}', space=vmem, size = 0x9000, scoped, tag = 'internal scratch']
  #allocation2 [shape = 'f32[2,4]{1,0:T(2,128)}', space=vmem, size = 0x400, scoped, tag = 'scratch operand']
  %s0 = inlined_call_operand.hbm [shape: f32[2,4,256], index: 0, kind: input, shape index: {}]
  %s1 = inlined_call_operand.hbm [shape: f32[4,128], index: 1, kind: input, shape index: {}]
  %s2 = inlined_call_operand.vmem [shape: f32[1,128], index: 2, kind: input, shape index: {}]
  %s3 = inlined_call_operand.hbm [shape: f32[128,128], index: 3, kind: input, shape index: {}]
  %s4 = inlined_call_operand.vmem [shape: f32[1,128], index: 4, kind: input, shape index: {}]
  %s5 = inlined_call_operand.hbm [shape: f32[2,128], index: 5, kind: output, shape index: {}]
  %s6 = sld [smem:[#allocation0]]
  $region50: #{tpu_custom_call.1} parent=0
    _
  %s8 = ssub.s32 1, %s6
  %s9 = scalar_select 0, %s8, %s6
  $region1: #{tpu_custom_call.1} parent=0
    #allocation3 [shape = 'u8[8192]{0}', space=vmem, size = 0x2000, scoped, tag = 'input window, operand 0, single buffered']
    #allocation4 [shape = 's32[1]{0}', space=sflag, size = 0x4, scoped, tag = 'scoped memory for tpu_custom_call.1']
    #allocation5 [shape = 's32[1]{0}', space=sflag, size = 0x4, scoped, tag = 'scoped memory for tpu_custom_call.1']
    #allocation6 [shape = 'u8[2048]{0}', space=vmem, size = 0x800, scoped, tag = 'input window, operand 1, single buffered']
    #allocation7 [shape = 's32[1]{0}', space=sflag, size = 0x4, scoped, tag = 'scoped memory for tpu_custom_call.1']
    #allocation8 [shape = 'u8[65536]{0}', space=vmem, size = 0x10000, scoped, tag = 'input window, operand 3, single buffered']
    #allocation9 [shape = 'u8[1024]{0}', space=vmem, size = 0x400, scoped, tag = 'output window, operand 0, single buffered']
    %10 = vsyncpa [#allocation4], 0
    %11 = vsyncpa [#allocation7], 0
    %12 = vsyncpa [#allocation5], 0
    // Predicated region
    $region2: #{tpu_custom_call.1} parent=1 // pred_check
      _
    $region3: #{tpu_custom_call.1} parent=1 // pred_check_branch
      %14 = sbr.rel (0) target = $region5
    $region4: #{tpu_custom_call.1} parent=1 // pred_region
      %16 = vsyncadd [#allocation4], 0
      %s17 = sshll.u32 %s0, 4
      %s18 = int_to_ptr.hbm [resolvable:$true] %s17
      %s19 = sshll.u32 [#allocation3], 4
      %s20 = int_to_ptr.vmem [resolvable:$true] %s19
      %25 = dma.hbm_to_vmem [thread:$0]  %s18, 256, %s20, [#allocation4], 128, 128, 8
    $region5: #{tpu_custom_call.1} parent=1 // pred_fallthru
      _
    // Predicated region
    $region6: #{tpu_custom_call.1} parent=1 // pred_check
      _
    $region7: #{tpu_custom_call.1} parent=1 // pred_check_branch
      %27 = sbr.rel (0) target = $region9
    $region8: #{tpu_custom_call.1} parent=1 // pred_region
      %29 = vsyncadd [#allocation7], 0
      %s31 = sshll.u32 %s1, 4
      %s32 = int_to_ptr.hbm [resolvable:$true] %s31
      %s33 = sshll.u32 [#allocation6], 4
      %s34 = int_to_ptr.vmem [resolvable:$true] %s33
      %36 = dma.hbm_to_vmem [thread:$0]  %s32, 64, %s34, [#allocation7]
    $region9: #{tpu_custom_call.1} parent=1 // pred_fallthru
      _
    // Predicated region
    $region10: #{tpu_custom_call.1} parent=1 // pred_check
      _
    $region11: #{tpu_custom_call.1} parent=1 // pred_check_branch
      %38 = sbr.rel (0) target = $region13
    $region12: #{tpu_custom_call.1} parent=1 // pred_region
      _
    $region13: #{tpu_custom_call.1} parent=1 // pred_fallthru
      _
    // Predicated region
    $region14: #{tpu_custom_call.1} parent=1 // pred_check
      _
    $region15: #{tpu_custom_call.1} parent=1 // pred_check_branch
      %40 = sbr.rel (0) target = $region17
    $region16: #{tpu_custom_call.1} parent=1 // pred_region
      %42 = vsyncadd [#allocation7], 0
      %s43 = sshll.u32 %s3, 4
      %s44 = int_to_ptr.hbm [resolvable:$true] %s43
      %s45 = sshll.u32 [#allocation8], 4
      %s46 = int_to_ptr.vmem [resolvable:$true] %s45
      %51 = dma.hbm_to_vmem [thread:$0]  %s44, 2048, %s46, [#allocation7], 128, 128, 8
    $region17: #{tpu_custom_call.1} parent=1 // pred_fallthru
      _
    // Predicated region
    $region18: #{tpu_custom_call.1} parent=1 // pred_check
      _
    $region19: #{tpu_custom_call.1} parent=1 // pred_check_branch
      %53 = sbr.rel (0) target = $region21
    $region20: #{tpu_custom_call.1} parent=1 // pred_region
      _
    $region21: #{tpu_custom_call.1} parent=1 // pred_fallthru
      _
    // Predicated region
    $region22: #{tpu_custom_call.1} parent=1 // pred_check
      _
    $region23: #{tpu_custom_call.1} parent=1 // pred_check_branch
      %55 = sbr.rel (0) target = $region25
    $region24: #{tpu_custom_call.1} parent=1 // pred_region
      %57 = dma.done [#allocation4], 256
    $region25: #{tpu_custom_call.1} parent=1 // pred_fallthru
      _
    // Predicated region
    $region26: #{tpu_custom_call.1} parent=1 // pred_check
      _
    $region27: #{tpu_custom_call.1} parent=1 // pred_check_branch
      %59 = sbr.rel (0) target = $region29
    $region28: #{tpu_custom_call.1} parent=1 // pred_region
      %61 = dma.done [#allocation7], 64
    $region29: #{tpu_custom_call.1} parent=1 // pred_fallthru
      _
    // Predicated region
    $region30: #{tpu_custom_call.1} parent=1 // pred_check
      _
    $region31: #{tpu_custom_call.1} parent=1 // pred_check_branch
      %63 = sbr.rel (0) target = $region33
    $region32: #{tpu_custom_call.1} parent=1 // pred_region
      %65 = dma.done [#allocation7], 2048
    $region33: #{tpu_custom_call.1} parent=1 // pred_fallthru
      _
    %p66 = scmp.eq.s32.totalorder 0, 0
    // Predicated region
    $region34: #{tpu_custom_call.1} parent=1 // pred_check
      %p67 = pneg %p66
    $region35: #{tpu_custom_call.1} parent=1 // pred_check_branch
      %69 = sbr.rel (%p67) target = $region37
    $region36: #{tpu_custom_call.1} parent=1 // pred_region
      %vm70 = vcmask 25600
      %71 = vst.msk [vmem:[#allocation2] sm:$0x3] %vm70, 0.0
    $region37: #{tpu_custom_call.1} parent=1 // pred_fallthru
      _
    %v72 = vld [vmem:[#allocation3] sm:$0xff]
    %v73 = vld [vmem:[#allocation3 + $0x8] sm:$0xff]
    %v74 = vld [vmem:[#allocation2] sm:$0x3]
    %77 = vst [vmem:[#allocation1] ss:$2 sm:$0xff] %v72
    %v78 = vld.sshfl [vmem:[#allocation1] sm:$0xff pattern:$0x75316420]
    %v79 = vld.sshfl [vmem:[#allocation1 + $0x8] sm:$0xff pattern:$0x75316420]
    %s80 = scalar_lea.vmem [#allocation1], 16
    %81 = vst [vmem:[%s80] ss:$2 sm:$0xff] %v73
    %v82 = vld.sshfl [vmem:[#allocation1 + $0x10] sm:$0xff pattern:$0x75316420]
    %v83 = vld.sshfl [vmem:[#allocation1 + $0x18] sm:$0xff pattern:$0x75316420]
    %vm88 = vcmask 1043456
    %v89 = vsel %vm88, %v78, 0.0
    %v90 = vsel %vm88, %v79, 0.0
    %v91 = vadd.f32 %v89, %v90
    %92 = vadd.xlane.f32.xlu0 %v91
    %v93 = vpop.xlane.xlu0 %92
    %v94 = vsel %vm88, %v82, 0.0
    %v95 = vsel %vm88, %v83, 0.0
    %v96 = vadd.f32 %v94, %v95
    %97 = vadd.xlane.f32.xlu0 %v96
    %v98 = vpop.xlane.xlu0 %97
    %v101 = vlaneseq
    %v102 = vand.u32 %v101, 127
    %v103 = vperm.slane %v93, %v102
    %v104 = vperm.slane %v98, %v102
    %vm105 = vcmask 1041409
    %v106 = vsel %vm105, %v104, %v103
    %v108 = vadd.f32 %v74, %v106
    %vm109 = vcmask 25600
    %110 = vst.msk [vmem:[#allocation2] sm:$0x3] %vm109, %v108
    // Predicated region
    $region38: #{tpu_custom_call.1} parent=1 // pred_check
      %p111 = pneg %p66
    $region39: #{tpu_custom_call.1} parent=1 // pred_check_branch
      %113 = sbr.rel (%p111) target = $region41
    $region40: #{tpu_custom_call.1} parent=1 // pred_region
      %v114 = vld [vmem:[#allocation2] sm:$0x3]
      %v115 = vmul.f32 %v114, 0.00390625
      %v116 = vld [vmem:[#allocation6] sm:$0xf]
      %v117 = vld [vmem:[%s2] sm:$0x1]
      %v119 = vperm.slane %v117, 0
      %vm121 = vcmask 31744
      %v123 = vsel %vm121, %v115, 0
      %v126 = vsel %vm88, %v116, 0
      %128 = vmatpush.msra.mxu0 0.0
      %129 = vmatpush.msra.mxu0 0.0
      %130 = vmatpush.msra.mxu0 0.0
      %131 = vmatpush.msra.mxu0 0.0
      %132 = vmatpush.msra.mxu0 0.0
      %133 = vmatpush.msra.mxu0 0.0
      %134 = vmatpush.msra.mxu0 0.0
      %135 = vmatpush.msra.mxu0 0.0
      %136 = vmatpush.msra.mxu0 0.0
      %137 = vmatpush.msra.mxu0 0.0
      %138 = vmatpush.msra.mxu0 0.0
      %139 = vmatpush.msra.mxu0 0.0
      %140 = vmatpush.msra.mxu0 0.0
      %141 = vmatpush.msra.mxu0 0.0
      %142 = vmatpush.msra.mxu0 0.0
      %143 = vmatpush.msra.mxu0 %v126
      %144 = vmatmul.f32.gmra.mxu0 %v123
      %v145 = vpop.f32.mrf.mxu0
      %v146 = vadd.f32 %v119, %v145
      %147 = vdwg.mxu0
      %v148 = vld [vmem:[#allocation8] sm:$0xff]
      %v149 = vld [vmem:[#allocation8 + $0x8] sm:$0xff]
      %v150 = vld [vmem:[#allocation8 + $0x10] sm:$0xff]
      %v151 = vld [vmem:[#allocation8 + $0x18] sm:$0xff]
      %v152 = vld [vmem:[#allocation8 + $0x20] sm:$0xff]
      %v153 = vld [vmem:[#allocation8 + $0x28] sm:$0xff]
      %v154 = vld [vmem:[#allocation8 + $0x30] sm:$0xff]
      %v155 = vld [vmem:[#allocation8 + $0x38] sm:$0xff]
      %v156 = vld [vmem:[#allocation8 + $0x40] sm:$0xff]
      %v157 = vld [vmem:[#allocation8 + $0x48] sm:$0xff]
      %v158 = vld [vmem:[#allocation8 + $0x50] sm:$0xff]
      %v159 = vld [vmem:[#allocation8 + $0x58] sm:$0xff]
      %v160 = vld [vmem:[#allocation8 + $0x60] sm:$0xff]
      %v161 = vld [vmem:[#allocation8 + $0x68] sm:$0xff]
      %v162 = vld [vmem:[#allocation8 + $0x70] sm:$0xff]
      %v163 = vld [vmem:[#allocation8 + $0x78] sm:$0xff]
      %v164 = vld [vmem:[%s4] sm:$0x1]
      %v166 = vperm.slane %v164, 0
      %168 = vmatpush.msra.mxu0 %v163
      %169 = vmatpush.msra.mxu0 %v162
      %170 = vmatpush.msra.mxu0 %v161
      %171 = vmatpush.msra.mxu0 %v160
      %172 = vmatpush.msra.mxu0 %v159
      %173 = vmatpush.msra.mxu0 %v158
      %174 = vmatpush.msra.mxu0 %v157
      %175 = vmatpush.msra.mxu0 %v156
      %176 = vmatpush.msra.mxu0 %v155
      %177 = vmatpush.msra.mxu0 %v154
      %178 = vmatpush.msra.mxu0 %v153
      %179 = vmatpush.msra.mxu0 %v152
      %180 = vmatpush.msra.mxu0 %v151
      %181 = vmatpush.msra.mxu0 %v150
      %182 = vmatpush.msra.mxu0 %v149
      %183 = vmatpush.msra.mxu0 %v148
      %184 = vmatmul.f32.gmra.mxu0 %v146
      %v185 = vpop.f32.mrf.mxu0
      %v186 = vadd.f32 %v166, %v185
      %187 = vdwg.mxu0
      %188 = vst [vmem:[#allocation9] sm:$0x3] %v186
    $region41: #{tpu_custom_call.1} parent=1 // pred_fallthru
      _
    // Predicated region
    $region42: #{tpu_custom_call.1} parent=1 // pred_check
      _
    $region43: #{tpu_custom_call.1} parent=1 // pred_check_branch
      %190 = sbr.rel (0) target = $region45
    $region44: #{tpu_custom_call.1} parent=1 // pred_region
      %192 = vsyncadd [#allocation5], 0
      %s194 = sshll.u32 [#allocation9], 4
      %s195 = int_to_ptr.vmem [resolvable:$true] %s194
      %s196 = sshll.u32 %s5, 4
      %s197 = int_to_ptr.hbm [resolvable:$true] %s196
      %199 = dma.vmem_to_hbm [thread:$0]  %s195, 32, %s197, [#allocation5]
    $region45: #{tpu_custom_call.1} parent=1 // pred_fallthru
      _
    // Predicated region
    $region46: #{tpu_custom_call.1} parent=1 // pred_check
      _
    $region47: #{tpu_custom_call.1} parent=1 // pred_check_branch
      %201 = sbr.rel (0) target = $region49
    $region48: #{tpu_custom_call.1} parent=1 // pred_region
      %203 = dma.done [#allocation5], 32
    $region49: #{tpu_custom_call.1} parent=1 // pred_fallthru
      _
    %204 = vsyncpa [#allocation4], 1
    %205 = vsyncpa [#allocation7], 1
    %206 = vsyncpa [#allocation5], 1

</llo_original>
